<compile_context>
chip_gen: v7x
topology: tpu7x:2x2x1
jax: 0.10.0
libtpu: 0.0.40
codegen_flags: <defaults>
</compile_context>

<pallas_src>
import functools

import jax
import jax.numpy as jnp
from jax.experimental import pallas as pl
from jax.experimental.pallas import tpu as pltpu


def _wce_kernel(pred_ref, targ_ref, widx_ref, out_ref, acc_ref,
                *, n_rows, tile_rows, steps_per_core, needs_mask):
    c = pl.program_id(0)          # core-split index ("parallel")
    i = pl.program_id(1)          # streaming step inside this core's range
    nsteps = pl.num_programs(1)

    @pl.when(i == 0)
    def _init():
        acc_ref[0] = jnp.float32(0.0)
        acc_ref[1] = jnp.float32(0.0)

    # Cast on load; clip matches torch.clamp on f32 (1 - 1e-12 rounds to 1.0).
    p = pred_ref[...].astype(jnp.float32)
    t = targ_ref[...].astype(jnp.float32)
    w = widx_ref[...].astype(jnp.float32)                        # (TN, 1)

    logp = jnp.log(jnp.clip(p, 1e-12, 1.0 - 1e-12) + 1e-9)       # EUP
    row = jnp.sum(t * logp, axis=-1, keepdims=True)              # (TN, 1) XLU

    if needs_mask:
        # Mask rows past the true batch size (ragged last tile / clamped
        # repeat tiles).  Masking the (TN,1) row-sum — not the (TN,K)
        # product — is ~K x cheaper and still squashes NaN garbage coming
        # from the OOB-padded region (0 * NaN would not).
        row0 = (c * steps_per_core + i) * tile_rows
        row_ids = row0 + jax.lax.broadcasted_iota(
            jnp.int32, (tile_rows, 1), 0)
        valid = row_ids < n_rows                                  # (TN, 1)
        row = jnp.where(valid, row, 0.0)
        w = jnp.where(valid, w, 0.0)

    # Scalar accumulation in SMEM: no per-step (TN,K) VMEM read-modify-write,
    # so the scarce vector-store slot stays free for the pipeline.
    acc_ref[0] += jnp.sum(w * row)
    acc_ref[1] += jnp.sum(w)

    @pl.when(i == nsteps - 1)
    def _finalize():
        out_ref[0, 0] = acc_ref[0]
        out_ref[0, 1] = acc_ref[1]


def _vmem_capacity_bytes(default=128 * 1024 * 1024):
    try:
        info = pltpu.get_tpu_info()
        cap = getattr(info, "vmem_capacity_bytes", None)
        if cap:
            return int(cap)
    except Exception:
        pass
    return default


def weighted_cross_entropy_loss(predictions, targets, idx, weights):
    """predictions: (N, K), targets: (N, K), idx: (N,) int into weights,
    weights: (W,) float. Returns a scalar f32 loss."""
    N, K = predictions.shape

    # Glue: per-sample weight gather (torch.gather(weights, 0, idx)).
    w_idx = weights[idx].reshape(N, 1).astype(jnp.float32)

    # ---- generation-aware tiling -------------------------------------------
    vmem_cap = _vmem_capacity_bytes()
    # ~48 MiB of tiles / 96 MiB scoped limit on 128 MiB parts (v5e/v6e),
    # ~24 MiB / 48 MiB on 64 MiB parts (v7x).
    tile_budget = max(8 * 1024 * 1024, (vmem_cap * 3) // 8)
    vmem_limit = max(32 * 1024 * 1024,
                     min((vmem_cap * 3) // 4, vmem_cap - 16 * 1024 * 1024))

    lane = 128
    k_pad = pl.cdiv(K, lane) * lane
    itemsize = predictions.dtype.itemsize + targets.dtype.itemsize
    # 2 double-buffered data tiles + double-buffered lane-padded f32 w column
    # (no VMEM accumulator any more).
    per_row_bytes = 2 * k_pad * itemsize + 2 * lane * 4
    tn_cap = max(8, (tile_budget // per_row_bytes) // 8 * 8)
    TN = N if N <= tn_cap else tn_cap

    n_blocks = pl.cdiv(N, TN)
    num_splits = 2 if n_blocks >= 2 else 1      # v7x: half of N per TensorCore
    steps_per_core = pl.cdiv(n_blocks, num_splits)
    grid = (num_splits, steps_per_core)
    needs_mask = (num_splits * steps_per_core * TN) != N

    def data_map(c, i):
        # Clamp so a fully-out-of-range step re-reads the last valid block
        # (its logical rows are >= N and get masked to zero in-kernel).
        return (jnp.minimum(c * steps_per_core + i, n_blocks - 1), 0)

    kernel = functools.partial(
        _wce_kernel, n_rows=N, tile_rows=TN,
        steps_per_core=steps_per_core, needs_mask=needs_mask)

    cost = pl.CostEstimate(
        flops=5 * N * K,
        transcendentals=N * K,
        bytes_accessed=N * K * itemsize + N * 4 + 8 * num_splits,
    )

    partials = pl.pallas_call(
        kernel,
        out_shape=jax.ShapeDtypeStruct((num_splits, 2), jnp.float32),
        grid_spec=pltpu.PrefetchScalarGridSpec(
            num_scalar_prefetch=0,
            grid=grid,
            in_specs=[
                pl.BlockSpec((TN, K), data_map),
                pl.BlockSpec((TN, K), data_map),
                pl.BlockSpec((TN, 1), data_map),
            ],
            out_specs=pl.BlockSpec((1, 2), lambda c, i: (c, 0),
                                   memory_space=pltpu.SMEM),
            scratch_shapes=[
                pltpu.SMEM((2,), jnp.float32),   # [S_c, W_c] running sums
            ],
        ),
        compiler_params=pltpu.CompilerParams(
            dimension_semantics=("parallel", "arbitrary"),
            vmem_limit_bytes=vmem_limit,
        ),
        cost_estimate=cost,
    )(predictions, targets, w_idx)

    s_total = jnp.sum(partials[:, 0])
    w_total = jnp.sum(partials[:, 1])
    # (-S / N) / (W / N) == -S / W
    return -s_total / w_total


def _reference(predictions, targets, idx, weights):
    eps = 1e-12
    p = jnp.clip(predictions.astype(jnp.float32), eps, 1.0 - eps)
    n = predictions.shape[0]
    w_idx = weights[idx]
    ce = -jnp.sum(w_idx * jnp.sum(targets.astype(jnp.float32)
                                  * jnp.log(p + 1e-9), axis=1)) / n
    return ce / jnp.mean(w_idx)


if __name__ == "__main__":
    key = jax.random.PRNGKey(0)
    k1, k2, k3, k4 = jax.random.split(key, 4)

    N, K, W = 8, 32, 10

    # predictions: probabilities (softmax of random logits), shape (N, K)
    logits = jax.random.normal(k1, (N, K), dtype=jnp.float32)
    predictions = jax.nn.softmax(logits, axis=-1)

    # targets: one-hot labels, shape (N, K)
    labels = jax.random.randint(k2, (N,), 0, K)
    targets = jax.nn.one_hot(labels, K, dtype=jnp.float32)

    # idx into a per-class weight table of size W
    idx = jax.random.randint(k3, (N,), 0, W).astype(jnp.int32)
    weights = jax.random.uniform(k4, (W,), dtype=jnp.float32,
                                 minval=0.5, maxval=2.0)

    loss = weighted_cross_entropy_loss(predictions, targets, idx, weights)
    loss = jax.block_until_ready(loss)

    ref = _reference(predictions, targets, idx, weights)
    assert jnp.allclose(loss, ref, rtol=1e-5, atol=1e-5), (loss, ref)

    print("KERNEL_OK")
</pallas_src>

<mosaic_0001>
module attributes {stable_mosaic.version = 11 : i64} {
  func.func @_wce_kernel(%arg0: i32, %arg1: i32, %arg2: memref<8x32xf32, #tpu.memory_space<vmem>>, %arg3: memref<8x32xf32, #tpu.memory_space<vmem>>, %arg4: memref<8x1xf32, #tpu.memory_space<vmem>>, %arg5: memref<1x2xf32, #tpu.memory_space<smem>>, %arg6: memref<2xf32, #tpu.memory_space<smem>>) attributes {dimension_semantics = [#tpu.dimension_semantics<parallel>, #tpu.dimension_semantics<arbitrary>], iteration_bounds = array<i64: 1, 1>, scalar_prefetch = 0 : i64, scratch_operands = 1 : i64, tpu.core_type = #tpu.core_type<tc>, window_params = [{transform_indices = @transform_0, window_bounds = array<i64: 8, 32>}, {transform_indices = @transform_1, window_bounds = array<i64: 8, 32>}, {transform_indices = @transform_2, window_bounds = array<i64: 8, 1>}, {transform_indices = @transform_3, window_bounds = array<i64: 1, 2>}]} {
    %c0_i32 = arith.constant 0 : i32
    %0 = arith.cmpi eq, %arg1, %c0_i32 : i32
    %1 = arith.extui %0 : i1 to i32
    %c0_i32_0 = arith.constant 0 : i32
    %2 = arith.cmpi ne, %1, %c0_i32_0 : i32
    scf.if %2 {
      %cst_16 = arith.constant 0.000000e+00 : f32
      %c0_17 = arith.constant 0 : index
      %34 = memref.load %arg6[%c0_17] : memref<2xf32, #tpu.memory_space<smem>>
      memref.store %cst_16, %arg6[%c0_17] : memref<2xf32, #tpu.memory_space<smem>>
      %cst_18 = arith.constant 0.000000e+00 : f32
      %c1_19 = arith.constant 1 : index
      %35 = memref.load %arg6[%c1_19] : memref<2xf32, #tpu.memory_space<smem>>
      memref.store %cst_18, %arg6[%c1_19] : memref<2xf32, #tpu.memory_space<smem>>
    } else {
    }
    %c0 = arith.constant 0 : index
    %c0_1 = arith.constant 0 : index
    %3 = vector.load %arg2[%c0, %c0_1] : memref<8x32xf32, #tpu.memory_space<vmem>>, vector<8x32xf32>
    %c0_2 = arith.constant 0 : index
    %c0_3 = arith.constant 0 : index
    %4 = vector.load %arg3[%c0_2, %c0_3] : memref<8x32xf32, #tpu.memory_space<vmem>>, vector<8x32xf32>
    %c0_4 = arith.constant 0 : index
    %c0_5 = arith.constant 0 : index
    %5 = vector.load %arg4[%c0_4, %c0_5] : memref<8x1xf32, #tpu.memory_space<vmem>>, vector<8x1xf32>
    %cst = arith.constant 9.99999996E-13 : f32
    %cst_6 = arith.constant 1.000000e+00 : f32
    %6 = vector.broadcast %cst : f32 to vector<8x32xf32>
    %7 = arith.maximumf %6, %3 : vector<8x32xf32>
    %8 = vector.broadcast %cst_6 : f32 to vector<8x32xf32>
    %9 = arith.minimumf %8, %7 : vector<8x32xf32>
    %cst_7 = arith.constant 9.99999971E-10 : f32
    %10 = vector.broadcast %cst_7 : f32 to vector<8x32xf32>
    %11 = arith.addf %9, %10 : vector<8x32xf32>
    %12 = math.log %11 : vector<8x32xf32>
    %13 = arith.mulf %4, %12 : vector<8x32xf32>
    %cst_8 = arith.constant dense<0.000000e+00> : vector<8xf32>
    %14 = vector.multi_reduction <add>, %13, %cst_8 [1] : vector<8x32xf32> to vector<8xf32>
    %15 = vector.shape_cast %14 : vector<8xf32> to vector<8x1xf32>
    %c0_9 = arith.constant 0 : index
    %16 = memref.load %arg6[%c0_9] : memref<2xf32, #tpu.memory_space<smem>>
    %17 = arith.mulf %5, %15 : vector<8x1xf32>
    %18 = vector.shape_cast %17 : vector<8x1xf32> to vector<1x8x1xf32>
    %cst_10 = arith.constant dense<0.000000e+00> : vector<1xf32>
    %19 = vector.multi_reduction <add>, %18, %cst_10 [1, 2] : vector<1x8x1xf32> to vector<1xf32>
    %20 = vector.shape_cast %19 : vector<1xf32> to vector<1x1x1xf32>
    %21 = vector.extract %20[0, 0, 0] : f32 from vector<1x1x1xf32>
    %22 = arith.addf %16, %21 : f32
    %c0_11 = arith.constant 0 : index
    %23 = memref.load %arg6[%c0_11] : memref<2xf32, #tpu.memory_space<smem>>
    memref.store %22, %arg6[%c0_11] : memref<2xf32, #tpu.memory_space<smem>>
    %c1 = arith.constant 1 : index
    %24 = memref.load %arg6[%c1] : memref<2xf32, #tpu.memory_space<smem>>
    %25 = vector.shape_cast %5 : vector<8x1xf32> to vector<1x8x1xf32>
    %cst_12 = arith.constant dense<0.000000e+00> : vector<1xf32>
    %26 = vector.multi_reduction <add>, %25, %cst_12 [1, 2] : vector<1x8x1xf32> to vector<1xf32>
    %27 = vector.shape_cast %26 : vector<1xf32> to vector<1x1x1xf32>
    %28 = vector.extract %27[0, 0, 0] : f32 from vector<1x1x1xf32>
    %29 = arith.addf %24, %28 : f32
    %c1_13 = arith.constant 1 : index
    %30 = memref.load %arg6[%c1_13] : memref<2xf32, #tpu.memory_space<smem>>
    memref.store %29, %arg6[%c1_13] : memref<2xf32, #tpu.memory_space<smem>>
    %c0_i32_14 = arith.constant 0 : i32
    %31 = arith.cmpi eq, %arg1, %c0_i32_14 : i32
    %32 = arith.extui %31 : i1 to i32
    %c0_i32_15 = arith.constant 0 : i32
    %33 = arith.cmpi ne, %32, %c0_i32_15 : i32
    scf.if %33 {
      %c0_16 = arith.constant 0 : index
      %34 = memref.load %arg6[%c0_16] : memref<2xf32, #tpu.memory_space<smem>>
      %c0_17 = arith.constant 0 : index
      %c0_18 = arith.constant 0 : index
      %35 = memref.load %arg5[%c0_17, %c0_18] : memref<1x2xf32, #tpu.memory_space<smem>>
      memref.store %34, %arg5[%c0_17, %c0_18] : memref<1x2xf32, #tpu.memory_space<smem>>
      %c1_19 = arith.constant 1 : index
      %36 = memref.load %arg6[%c1_19] : memref<2xf32, #tpu.memory_space<smem>>
      %c0_20 = arith.constant 0 : index
      %c1_21 = arith.constant 1 : index
      %37 = memref.load %arg5[%c0_20, %c1_21] : memref<1x2xf32, #tpu.memory_space<smem>>
      memref.store %36, %arg5[%c0_20, %c1_21] : memref<1x2xf32, #tpu.memory_space<smem>>
    } else {
    }
    return
  }
  func.func @transform_0(%arg0: i32, %arg1: i32) -> (i32, i32) {
    %c1_i32 = arith.constant 1 : i32
    %0 = arith.muli %arg0, %c1_i32 : i32
    %1 = arith.addi %0, %arg1 : i32
    %c0_i32 = arith.constant 0 : i32
    %2 = arith.minsi %1, %c0_i32 : i32
    %c0_i32_0 = arith.constant 0 : i32
    %c0_i32_1 = arith.constant 0 : i32
    return %2, %c0_i32_0 : i32, i32
  }
  func.func @transform_1(%arg0: i32, %arg1: i32) -> (i32, i32) {
    %c1_i32 = arith.constant 1 : i32
    %0 = arith.muli %arg0, %c1_i32 : i32
    %1 = arith.addi %0, %arg1 : i32
    %c0_i32 = arith.constant 0 : i32
    %2 = arith.minsi %1, %c0_i32 : i32
    %c0_i32_0 = arith.constant 0 : i32
    %c0_i32_1 = arith.constant 0 : i32
    return %2, %c0_i32_0 : i32, i32
  }
  func.func @transform_2(%arg0: i32, %arg1: i32) -> (i32, i32) {
    %c1_i32 = arith.constant 1 : i32
    %0 = arith.muli %arg0, %c1_i32 : i32
    %1 = arith.addi %0, %arg1 : i32
    %c0_i32 = arith.constant 0 : i32
    %2 = arith.minsi %1, %c0_i32 : i32
    %c0_i32_0 = arith.constant 0 : i32
    %c0_i32_1 = arith.constant 0 : i32
    return %2, %c0_i32_0 : i32, i32
  }
  func.func @transform_3(%arg0: i32, %arg1: i32) -> (i32, i32) {
    %c0_i32 = arith.constant 0 : i32
    %c0_i32_0 = arith.constant 0 : i32
    return %arg0, %c0_i32 : i32, i32
  }
}

</mosaic_0001>

<llo_original>
// kernel: tpu_custom_call.1
$region0: #{tpu_custom_call.1}
  #allocation0 [shape = 'u32[]', space=smem, size = 0x4, offset = 0x4, fixed_abs, tag = 'smem constant byte address 0x4 - core index']
  #allocation1 [shape = 'u32[144,128]{1,0:T(1,128)}', space=vmem, size = 0x12000, scoped, tag = 'internal scratch']
  #allocation2 [shape = 'f32[2]{0:T(128)}', space=smem, size = 0x200, scoped, tag = 'scratch operand']
  %s0 = inlined_call_operand.hbm [shape: f32[8,32], index: 0, kind: input, shape index: {}]
  %s1 = inlined_call_operand.hbm [shape: f32[8,32], index: 1, kind: input, shape index: {}]
  %s2 = inlined_call_operand.hbm [shape: f32[8,1], index: 2, kind: input, shape index: {}]
  %s3 = inlined_call_operand.hbm [shape: f32[1,2], index: 3, kind: output, shape index: {}]
  %s4 = sld [smem:[#allocation0]]
  $region42: #{tpu_custom_call.1} parent=0
    _
  %s6 = ssub.s32 1, %s4
  %s7 = scalar_select 0, %s6, %s4
  $region1: #{tpu_custom_call.1} parent=0
    #allocation3 [shape = 'u8[4096]{0}', space=vmem, size = 0x1000, scoped, tag = 'input window, operand 0, single buffered']
    #allocation4 [shape = 's32[1]{0}', space=sflag, size = 0x4, scoped, tag = 'scoped memory for tpu_custom_call.1']
    #allocation5 [shape = 's32[1]{0}', space=sflag, size = 0x4, scoped, tag = 'scoped memory for tpu_custom_call.1']
    #allocation6 [shape = 'u8[4096]{0}', space=vmem, size = 0x1000, scoped, tag = 'input window, operand 1, single buffered']
    #allocation7 [shape = 's32[1]{0}', space=sflag, size = 0x4, scoped, tag = 'scoped memory for tpu_custom_call.1']
    #allocation8 [shape = 'u8[4096]{0}', space=vmem, size = 0x1000, scoped, tag = 'input window, operand 2, single buffered']
    #allocation9 [shape = 'u8[512]{0}', space=smem, size = 0x200, scoped, tag = 'output window, operand 0, single buffered']
    %8 = vsyncpa [#allocation4], 0
    %9 = vsyncpa [#allocation7], 0
    %10 = vsyncpa [#allocation5], 0
    // Predicated region
    $region2: #{tpu_custom_call.1} parent=1 // pred_check
      _
    $region3: #{tpu_custom_call.1} parent=1 // pred_check_branch
      %12 = sbr.rel (0) target = $region5
    $region4: #{tpu_custom_call.1} parent=1 // pred_region
      %s13 = sadd.s32 0, 0
      %p14 = scmp.lt.s32.totalorder %s13, 0
      %s15 = scalar_select %p14, %s13, 0
      %s17 = ssub.s32 128, 128
      %18 = vsyncadd [#allocation4], %s17
      %s19 = smul.addr %s15, 128
      %s20 = scalar_lea.hbm %s0, %s19
      %s22 = sshll.u32 [#allocation3], 4
      %s23 = int_to_ptr.vmem [resolvable:$true] %s22
      %25 = dma.hbm_to_vmem [thread:$0]  %s20, 128, %s23, [#allocation4]
    $region5: #{tpu_custom_call.1} parent=1 // pred_fallthru
      _
    // Predicated region
    $region6: #{tpu_custom_call.1} parent=1 // pred_check
      _
    $region7: #{tpu_custom_call.1} parent=1 // pred_check_branch
      %27 = sbr.rel (0) target = $region9
    $region8: #{tpu_custom_call.1} parent=1 // pred_region
      %s28 = sadd.s32 0, 0
      %p29 = scmp.lt.s32.totalorder %s28, 0
      %s30 = scalar_select %p29, %s28, 0
      %s32 = ssub.s32 128, 128
      %33 = vsyncadd [#allocation7], %s32
      %s34 = smul.addr %s30, 128
      %s35 = scalar_lea.hbm %s1, %s34
      %s37 = sshll.u32 [#allocation6], 4
      %s38 = int_to_ptr.vmem [resolvable:$true] %s37
      %40 = dma.hbm_to_vmem [thread:$0]  %s35, 128, %s38, [#allocation7]
    $region9: #{tpu_custom_call.1} parent=1 // pred_fallthru
      _
    // Predicated region
    $region10: #{tpu_custom_call.1} parent=1 // pred_check
      _
    $region11: #{tpu_custom_call.1} parent=1 // pred_check_branch
      %42 = sbr.rel (0) target = $region13
    $region12: #{tpu_custom_call.1} parent=1 // pred_region
      %s43 = sadd.s32 0, 0
      %p44 = scmp.lt.s32.totalorder %s43, 0
      %s45 = scalar_select %p44, %s43, 0
      %s47 = ssub.s32 128, 128
      %48 = vsyncadd [#allocation7], %s47
      %s49 = smul.addr %s45, 128
      %s50 = scalar_lea.hbm %s2, %s49
      %s52 = sshll.u32 [#allocation8], 4
      %s53 = int_to_ptr.vmem [resolvable:$true] %s52
      %55 = dma.hbm_to_vmem [thread:$0]  %s50, 128, %s53, [#allocation7]
    $region13: #{tpu_custom_call.1} parent=1 // pred_fallthru
      _
    // Predicated region
    $region14: #{tpu_custom_call.1} parent=1 // pred_check
      _
    $region15: #{tpu_custom_call.1} parent=1 // pred_check_branch
      %57 = sbr.rel (0) target = $region17
    $region16: #{tpu_custom_call.1} parent=1 // pred_region
      %58 = dma.done [#allocation4], 128
    $region17: #{tpu_custom_call.1} parent=1 // pred_fallthru
      _
    // Predicated region
    $region18: #{tpu_custom_call.1} parent=1 // pred_check
      _
    $region19: #{tpu_custom_call.1} parent=1 // pred_check_branch
      %60 = sbr.rel (0) target = $region21
    $region20: #{tpu_custom_call.1} parent=1 // pred_region
      %61 = dma.done [#allocation7], 128
    $region21: #{tpu_custom_call.1} parent=1 // pred_fallthru
      _
    // Predicated region
    $region22: #{tpu_custom_call.1} parent=1 // pred_check
      _
    $region23: #{tpu_custom_call.1} parent=1 // pred_check_branch
      %63 = sbr.rel (0) target = $region25
    $region24: #{tpu_custom_call.1} parent=1 // pred_region
      %64 = dma.done [#allocation7], 128
    $region25: #{tpu_custom_call.1} parent=1 // pred_fallthru
      _
    %s65 = sadd.s32 0, 0
    %p66 = scmp.lt.s32.totalorder %s65, 0
    %s67 = scalar_select %p66, %s65, 0
    %s68 = sadd.s32 0, 0
    %p69 = scmp.lt.s32.totalorder %s68, 0
    %s70 = scalar_select %p69, %s68, 0
    %s71 = sadd.s32 0, 0
    %p72 = scmp.lt.s32.totalorder %s71, 0
    %s73 = scalar_select %p72, %s71, 0
    %p74 = scmp.eq.s32.totalorder 0, 0
    // Predicated region
    $region26: #{tpu_custom_call.1} parent=1 // pred_check
      %p75 = pneg %p74
    $region27: #{tpu_custom_call.1} parent=1 // pred_check_branch
      %77 = sbr.rel (%p75) target = $region29
    $region28: #{tpu_custom_call.1} parent=1 // pred_region
      %s78 = scalar_lea.smem [#allocation2], 0
      %79 = sst [smem:[%s78]] 0.0
      %s80 = scalar_lea.smem [#allocation2], 1
      %81 = sst [smem:[%s80]] 0.0
    $region29: #{tpu_custom_call.1} parent=1 // pred_fallthru
      _
    %v82 = vld [vmem:[#allocation3] sm:$0xff]
    %v83 = vld [vmem:[#allocation6] sm:$0xff]
    %v84 = vld [vmem:[#allocation8] sm:$0xff]
    %v85 = vmax.f32 %v82, 1e-12
    %v86 = vmin.f32 %v85, 1.0
    %v87 = vadd.f32 %v86, 1e-09
    %v88 = vlog2.pop %v87
    %v89 = vmul.f32 %v88, 0.6931472
    %v90 = vmul.f32 %v83, %v89
    %vm91 = vcmask 261120
    %v92 = vsel %vm91, %v90, 0.0
    %93 = vadd.xlane.f32.xlu0 %v92
    %v94 = vpop.xlane.xlu0 %93
    %s95 = sld [smem:[#allocation2]]
    %v96 = vmul.f32 %v84, %v94
    %vm97 = vcmask 7168
    %v98 = vsel %vm97, %v96, 0.0
    %99 = vadd.xlane.f32.xlu0 %v98
    %v100 = vpop.xlane.xlu0 %99
    %v101 = vrot.slane %v100, 4
    %v102 = vadd.f32 %v100, %v101
    %v103 = vrot.slane %v102, 2
    %v104 = vadd.f32 %v102, %v103
    %v105 = vrot.slane %v104, 1
    %v106 = vadd.f32 %v104, %v105
    %s107 = vtos %v106
    %s108 = sadd.f32 %s95, %s107
    %s109 = scalar_lea.smem [#allocation2], 0
    %110 = sst [smem:[%s109]] %s108
    %s111 = sld [smem:[#allocation2 + $0x1]]
    %v112 = vsel %vm97, %v84, 0.0
    %113 = vadd.xlane.f32.xlu0 %v112
    %v114 = vpop.xlane.xlu0 %113
    %v115 = vrot.slane %v114, 4
    %v116 = vadd.f32 %v114, %v115
    %v117 = vrot.slane %v116, 2
    %v118 = vadd.f32 %v116, %v117
    %v119 = vrot.slane %v118, 1
    %v120 = vadd.f32 %v118, %v119
    %s121 = vtos %v120
    %s122 = sadd.f32 %s111, %s121
    %s123 = scalar_lea.smem [#allocation2], 1
    %124 = sst [smem:[%s123]] %s122
    // Predicated region
    $region30: #{tpu_custom_call.1} parent=1 // pred_check
      %p125 = pneg %p74
    $region31: #{tpu_custom_call.1} parent=1 // pred_check_branch
      %127 = sbr.rel (%p125) target = $region33
    $region32: #{tpu_custom_call.1} parent=1 // pred_region
      %s128 = sld [smem:[#allocation2]]
      %s129 = scalar_lea.smem [#allocation9], 0
      %130 = sst [smem:[%s129]] %s128
      %s131 = sld [smem:[#allocation2 + $0x1]]
      %s132 = scalar_lea.smem [#allocation9], 1
      %133 = sst [smem:[%s132]] %s131
    $region33: #{tpu_custom_call.1} parent=1 // pred_fallthru
      _
    // Predicated region
    $region34: #{tpu_custom_call.1} parent=1 // pred_check
      _
    $region35: #{tpu_custom_call.1} parent=1 // pred_check_branch
      %135 = sbr.rel (0) target = $region37
    $region36: #{tpu_custom_call.1} parent=1 // pred_region
      %s137 = ssub.s32 16, 16
      %138 = vsyncadd [#allocation5], %s137
      %141 = dma.smem_to_hbm [#allocation9], 16, %s3, [#allocation5]
    $region37: #{tpu_custom_call.1} parent=1 // pred_fallthru
      _
    // Predicated region
    $region38: #{tpu_custom_call.1} parent=1 // pred_check
      _
    $region39: #{tpu_custom_call.1} parent=1 // pred_check_branch
      %143 = sbr.rel (0) target = $region41
    $region40: #{tpu_custom_call.1} parent=1 // pred_region
      %144 = dma.done [#allocation5], 16
    $region41: #{tpu_custom_call.1} parent=1 // pred_fallthru
      _
    %145 = sfence
    %146 = vsyncpa [#allocation4], 1
    %147 = vsyncpa [#allocation7], 1
    %148 = vsyncpa [#allocation5], 1

</llo_original>
